<compile_context>
chip_gen: v5e
topology: v5e:2x2
jax: 0.10.0
libtpu: 0.0.40
codegen_flags: <defaults>
</compile_context>

<pallas_src>
import jax
import jax.numpy as jnp
from jax.experimental import pallas as pl
from jax.experimental.pallas import tpu as pltpu


# --------------------------------------------------------------------------- HW-aware helpers
def _vmem_capacity_bytes():
    try:
        return int(pltpu.get_tpu_info().vmem_capacity_bytes)
    except Exception:
        return 64 << 20            # conservative fallback: v7x per-TensorCore VMEM


def _compiler_params(parallel):
    cap = _vmem_capacity_bytes()
    # ~96 MiB limit on v5e/v6e (128 MiB physical), ~48 MiB on v7x (64 MiB physical).
    limit = min((cap * 3) // 4, cap - (8 << 20))
    return pltpu.CompilerParams(
        dimension_semantics=(("parallel",) if parallel else ("arbitrary",)),
        vmem_limit_bytes=limit,
    )


def _pick_tile_cls(n_cls, streamed_bytes_per_class, resident_bytes=0,
                   target_block_bytes=2 << 20):
    """Classes per grid step: big enough to amortize ~0.35us/step, small enough for
    double-buffered blocks to fit the generation's VMEM, and >=2 grid steps so both
    v7x TensorCores get work."""
    budget = (_vmem_capacity_bytes() * 3) // 8 - resident_bytes   # ~48 MiB v5e/v6e, ~24 MiB v7x
    by_budget = budget // max(1, 2 * streamed_bytes_per_class)    # x2: double-buffered blocks
    by_target = target_block_bytes // max(1, streamed_bytes_per_class)
    tile = int(max(1, min(n_cls, by_budget, by_target)))
    if n_cls >= 2:
        tile = min(tile, pl.cdiv(n_cls, 2))                       # guarantee >= 2 grid steps
    return max(1, tile)


# --------------------------------------------------------------------------- full concat kernel
def _prompt_concat_kernel(ctx_ref, prefix_ref, suffix_ref, out_ref):
    """One grid step = tile_cls classes.

    ctx_ref   : (n_ctx, D) generic ctx  OR  (tile_cls, n_ctx, D) class-specific ctx
    prefix_ref: (tile_cls, 1,     D)
    suffix_ref: (tile_cls, n_suf, D)
    out_ref   : (tile_cls, 1 + n_ctx + n_suf, D)
    """
    tile_cls, seq_len, d = out_ref.shape
    n_suf = suffix_ref.shape[1]
    n_ctx = seq_len - 1 - n_suf

    out_ref[:, 0:1, :] = prefix_ref[...].astype(out_ref.dtype)
    if len(ctx_ref.shape) == 2:                     # generic ctx -> broadcast over classes
        ctx = jnp.broadcast_to(ctx_ref[...][None, :, :], (tile_cls, n_ctx, d))
    else:                                           # CSC: class-specific ctx
        ctx = ctx_ref[...]
    out_ref[:, 1:1 + n_ctx, :] = ctx.astype(out_ref.dtype)
    out_ref[:, 1 + n_ctx:, :] = suffix_ref[...].astype(out_ref.dtype)


def prompt_learner_concat(ctx, token_prefix, token_suffix, *, tile_cls=None):
    """torch.cat([prefix, ctx(.expand), suffix], dim=1) with class blocking.

    Plain PromptLearner.forward(), and the template builder for the incremental path.
    """
    n_cls, _, ctx_dim = token_prefix.shape
    n_suf = token_suffix.shape[1]
    csc = (ctx.ndim == 3)
    n_ctx = ctx.shape[1] if csc else ctx.shape[0]
    seq_len = 1 + n_ctx + n_suf
    out_dtype = token_prefix.dtype
    bpe = jnp.dtype(out_dtype).itemsize

    # Per-class streamed bytes (prefix + suffix in, full prompt out, CSC ctx in);
    # generic ctx is a small VMEM-resident block (constant index_map).
    streamed = (1 + n_suf + seq_len) * ctx_dim * bpe
    resident = 0
    if csc:
        streamed += n_ctx * ctx_dim * jnp.dtype(ctx.dtype).itemsize
    else:
        resident = n_ctx * ctx_dim * jnp.dtype(ctx.dtype).itemsize
    if tile_cls is None:
        tile_cls = _pick_tile_cls(n_cls, streamed, resident)
    tile_cls = int(min(tile_cls, n_cls))

    if csc:
        ctx_spec = pl.BlockSpec((tile_cls, n_ctx, ctx_dim), lambda i: (i, 0, 0))
    else:
        ctx_spec = pl.BlockSpec((n_ctx, ctx_dim), lambda i: (0, 0))   # VMEM-resident

    # cdiv grid: partial tail block is fine for a pure copy (OOB writes are dropped).
    return pl.pallas_call(
        _prompt_concat_kernel,
        out_shape=jax.ShapeDtypeStruct((n_cls, seq_len, ctx_dim), out_dtype),
        grid=(pl.cdiv(n_cls, tile_cls),),
        in_specs=[
            ctx_spec,
            pl.BlockSpec((tile_cls, 1, ctx_dim), lambda i: (i, 0, 0)),
            pl.BlockSpec((tile_cls, n_suf, ctx_dim), lambda i: (i, 0, 0)),
        ],
        out_specs=pl.BlockSpec((tile_cls, seq_len, ctx_dim), lambda i: (i, 0, 0)),
        compiler_params=_compiler_params(parallel=True),
    )(ctx, token_prefix, token_suffix)


# --------------------------------------------------------------------------- incremental (ctx-row DMA) forward
def _make_ctx_scatter_kernel(*, n_cls, tile_cls, n_ctx, csc):
    """Writes exactly out[start:start+tile_cls, 1:1+n_ctx, :] per grid step via DMA.
    The aliased template provides every other token untouched."""

    if not csc:
        def kernel(ctx_ref, template_ref, out_ref, stage_ref, sem_ref):
            del template_ref                                    # frozen, provided via aliasing
            i = pl.program_id(0)
            last = pl.num_programs(0) - 1
            # Clamp so the tail tile overlaps the previous one instead of going OOB
            # (idempotent: identical ctx bytes).
            start = jnp.minimum(i * tile_cls, n_cls - tile_cls)

            @pl.when(i == 0)
            def _():                                            # stage replicated ctx once
                ctx = ctx_ref[...].astype(stage_ref.dtype)
                stage_ref[...] = jnp.broadcast_to(ctx[None, :, :], stage_ref.shape)

            slot = i % 2
            copy = pltpu.make_async_copy(
                stage_ref,
                out_ref.at[pl.ds(start, tile_cls), pl.ds(1, n_ctx), :],
                sem_ref.at[slot])
            copy.start()

            @pl.when(i > 0)
            def _():                                            # wait for the previous tile's DMA
                # all copies move the same byte count; only the semaphore slot matters
                pltpu.make_async_copy(
                    stage_ref,
                    out_ref.at[pl.ds(start, tile_cls), pl.ds(1, n_ctx), :],
                    sem_ref.at[1 - slot]).wait()

            @pl.when(i == last)
            def _():
                copy.wait()
        return kernel

    def kernel(ctx_ref, template_ref, out_ref, stage_ref, sem_ref):
        del template_ref
        i = pl.program_id(0)
        start = jnp.minimum(i * tile_cls, n_cls - tile_cls)
        in_copy = pltpu.make_async_copy(
            ctx_ref.at[pl.ds(start, tile_cls), :, :], stage_ref, sem_ref.at[0])
        in_copy.start()
        in_copy.wait()
        out_copy = pltpu.make_async_copy(
            stage_ref,
            out_ref.at[pl.ds(start, tile_cls), pl.ds(1, n_ctx), :],
            sem_ref.at[1])
        out_copy.start()
        out_copy.wait()
        # TODO(synk): double-buffer stage_ref so the CSC read of tile i+1 overlaps the
        #             write of tile i (CSC is not the CoOp default path).
    return kernel


def prompt_learner_forward(ctx, prompt_template, *, tile_cls=None):
    """Incremental forward: rewrite only tokens [1, 1+n_ctx) of the aliased template.

    prompt_template: (n_cls, 1+n_ctx+n_suf, D) holding the frozen prefix/suffix (the
    ctx rows' content is irrelevant - they are fully overwritten).  The template
    buffer is DONATED (input_output_aliases); do not reuse it after this call.
    Returns the full prompts tensor, identical to prompt_learner_concat().
    """
    n_cls, seq_len, ctx_dim = prompt_template.shape
    csc = (ctx.ndim == 3)
    n_ctx = ctx.shape[1] if csc else ctx.shape[0]
    assert 1 + n_ctx <= seq_len, (n_ctx, seq_len)
    out_dtype = prompt_template.dtype
    bpe = jnp.dtype(out_dtype).itemsize

    if csc and ctx.dtype != out_dtype:
        # DMA cannot cast; in CoOp ctx already shares the CLIP embedding dtype.
        ctx = ctx.astype(out_dtype)

    streamed = n_ctx * ctx_dim * bpe * (2 if csc else 1)      # stage write (+ CSC read)
    resident = 0 if csc else n_ctx * ctx_dim * jnp.dtype(ctx.dtype).itemsize
    if tile_cls is None:
        tile_cls = _pick_tile_cls(n_cls, streamed, resident)
    tile_cls = int(min(tile_cls, n_cls))
    num_tiles = pl.cdiv(n_cls, tile_cls)

    kernel = _make_ctx_scatter_kernel(n_cls=n_cls, tile_cls=tile_cls, n_ctx=n_ctx, csc=csc)
    ctx_spec = (pl.BlockSpec(memory_space=pl.ANY) if csc
                else pl.BlockSpec((n_ctx, ctx_dim), lambda i: (0, 0)))   # VMEM-resident

    return pl.pallas_call(
        kernel,
        out_shape=jax.ShapeDtypeStruct((n_cls, seq_len, ctx_dim), out_dtype),
        grid=(num_tiles,),
        in_specs=[ctx_spec,
                  pl.BlockSpec(memory_space=pl.ANY)],          # frozen template, no auto-DMA
        out_specs=pl.BlockSpec(memory_space=pl.ANY),           # written only via manual DMA
        scratch_shapes=[pltpu.VMEM((tile_cls, n_ctx, ctx_dim), out_dtype),
                        pltpu.SemaphoreType.DMA((2,))],
        input_output_aliases={1: 0},                           # output buffer == template buffer
        compiler_params=_compiler_params(parallel=False),      # pure-DMA kernel: megacore N/A
    )(ctx, prompt_template)


# --------------------------------------------------------------------------- demo / correctness check
if __name__ == "__main__":
    # Small deterministic setup (stands in for CLIP token embeddings).
    # n_cls=11 is deliberately not a multiple of the tile to exercise the tail paths.
    n_cls, n_ctx, ctx_dim = 11, 5, 128
    n_suf = 18
    seq_len = 1 + n_ctx + n_suf            # 24

    key = jax.random.PRNGKey(0)
    k_ctx, k_pre, k_suf, k_csc = jax.random.split(key, 4)

    # nn.init.normal_(ctx_vectors, std=0.02) — generic (non-CSC) context
    ctx = (0.02 * jax.random.normal(k_ctx, (n_ctx, ctx_dim))).astype(jnp.float32)
    # frozen token_embedding outputs for prefix / suffix
    token_prefix = jax.random.normal(k_pre, (n_cls, 1, ctx_dim)).astype(jnp.float32)
    token_suffix = jax.random.normal(k_suf, (n_cls, n_suf, ctx_dim)).astype(jnp.float32)

    # Pure-JAX reference: torch.cat([prefix, ctx.expand(n_cls,...), suffix], dim=1)
    ref = jnp.concatenate(
        [token_prefix,
         jnp.broadcast_to(ctx[None, :, :], (n_cls, n_ctx, ctx_dim)),
         token_suffix], axis=1)

    # (a) plain forward (full concat), also the template builder
    prompts_cat = jax.block_until_ready(
        prompt_learner_concat(ctx, token_prefix, token_suffix))
    assert prompts_cat.shape == (n_cls, seq_len, ctx_dim), prompts_cat.shape
    assert prompts_cat.dtype == ref.dtype
    assert jnp.array_equal(prompts_cat, ref), "full-concat kernel mismatch"

    # (b) hot-path forward: template built ONCE at "init" (zero ctx), then the per-step
    #     forward DMA-rewrites only the ctx rows of the donated/aliased template.
    template = prompt_learner_concat(jnp.zeros_like(ctx), token_prefix, token_suffix)
    prompts_fwd = jax.block_until_ready(prompt_learner_forward(ctx, template))
    assert prompts_fwd.shape == (n_cls, seq_len, ctx_dim)
    assert jnp.array_equal(prompts_fwd, ref), "incremental (ctx-row DMA) kernel mismatch"

    # (c) class-specific context (CSC): ctx is (n_cls, n_ctx, ctx_dim)
    ctx_csc = (0.02 * jax.random.normal(k_csc, (n_cls, n_ctx, ctx_dim))).astype(jnp.float32)
    ref_csc = jnp.concatenate([token_prefix, ctx_csc, token_suffix], axis=1)
    prompts_cat_csc = jax.block_until_ready(
        prompt_learner_concat(ctx_csc, token_prefix, token_suffix))
    assert jnp.array_equal(prompts_cat_csc, ref_csc), "CSC concat kernel mismatch"

    template_csc = prompt_learner_concat(jnp.zeros_like(ctx), token_prefix, token_suffix)
    prompts_fwd_csc = jax.block_until_ready(prompt_learner_forward(ctx_csc, template_csc))
    assert jnp.array_equal(prompts_fwd_csc, ref_csc), "CSC incremental kernel mismatch"

    print("KERNEL_OK")
</pallas_src>

<mosaic_0001>
module attributes {stable_mosaic.version = 11 : i64} {
  func.func @_prompt_concat_kernel(%arg0: i32, %arg1: memref<5x128xf32, #tpu.memory_space<vmem>>, %arg2: memref<6x1x128xf32, #tpu.memory_space<vmem>>, %arg3: memref<6x18x128xf32, #tpu.memory_space<vmem>>, %arg4: memref<6x24x128xf32, #tpu.memory_space<vmem>>) attributes {dimension_semantics = [#tpu.dimension_semantics<parallel>], iteration_bounds = array<i64: 2>, scalar_prefetch = 0 : i64, scratch_operands = 0 : i64, tpu.core_type = #tpu.core_type<tc>, window_params = [{pipeline_mode = #tpu.pipeline_mode<synchronous>, transform_indices = @transform_0, window_bounds = array<i64: 5, 128>}, {transform_indices = @transform_1, window_bounds = array<i64: 6, 1, 128>}, {transform_indices = @transform_2, window_bounds = array<i64: 6, 18, 128>}, {transform_indices = @transform_3, window_bounds = array<i64: 6, 24, 128>}]} {
    %c0 = arith.constant 0 : index
    %c0_0 = arith.constant 0 : index
    %c0_1 = arith.constant 0 : index
    %0 = vector.load %arg2[%c0, %c0_0, %c0_1] : memref<6x1x128xf32, #tpu.memory_space<vmem>>, vector<6x1x128xf32>
    %c0_2 = arith.constant 0 : index
    %c0_3 = arith.constant 0 : index
    %c0_4 = arith.constant 0 : index
    %1 = vector.load %arg4[%c0_2, %c0_3, %c0_4] : memref<6x24x128xf32, #tpu.memory_space<vmem>>, vector<6x1x128xf32>
    tpu.vector_store %arg4[%c0_2, %c0_3, %c0_4], %0 {strides = array<i32>} : memref<6x24x128xf32, #tpu.memory_space<vmem>>, vector<6x1x128xf32>,
    %c0_5 = arith.constant 0 : index
    %c0_6 = arith.constant 0 : index
    %2 = vector.load %arg1[%c0_5, %c0_6] : memref<5x128xf32, #tpu.memory_space<vmem>>, vector<5x128xf32>
    %3 = vector.shape_cast %2 : vector<5x128xf32> to vector<1x5x128xf32>
    %4 = vector.shape_cast %3 : vector<1x5x128xf32> to vector<1x5x128xf32>
    %5 = vector.broadcast %4 : vector<1x5x128xf32> to vector<6x5x128xf32>
    %c0_7 = arith.constant 0 : index
    %c1 = arith.constant 1 : index
    %c0_8 = arith.constant 0 : index
    %6 = vector.load %arg4[%c0_7, %c1, %c0_8] : memref<6x24x128xf32, #tpu.memory_space<vmem>>, vector<6x5x128xf32>
    tpu.vector_store %arg4[%c0_7, %c1, %c0_8], %5 {strides = array<i32>} : memref<6x24x128xf32, #tpu.memory_space<vmem>>, vector<6x5x128xf32>,
    %c0_9 = arith.constant 0 : index
    %c0_10 = arith.constant 0 : index
    %c0_11 = arith.constant 0 : index
    %7 = vector.load %arg3[%c0_9, %c0_10, %c0_11] : memref<6x18x128xf32, #tpu.memory_space<vmem>>, vector<6x18x128xf32>
    %c0_12 = arith.constant 0 : index
    %c6 = arith.constant 6 : index
    %c0_13 = arith.constant 0 : index
    %8 = vector.load %arg4[%c0_12, %c6, %c0_13] : memref<6x24x128xf32, #tpu.memory_space<vmem>>, vector<6x18x128xf32>
    tpu.vector_store %arg4[%c0_12, %c6, %c0_13], %7 {strides = array<i32>} : memref<6x24x128xf32, #tpu.memory_space<vmem>>, vector<6x18x128xf32>,
    return
  }
  func.func @transform_0(%arg0: i32) -> (i32, i32) {
    %c0_i32 = arith.constant 0 : i32
    %c0_i32_0 = arith.constant 0 : i32
    %c0_i32_1 = arith.constant 0 : i32
    return %c0_i32, %c0_i32_0 : i32, i32
  }
  func.func @transform_1(%arg0: i32) -> (i32, i32, i32) {
    %c0_i32 = arith.constant 0 : i32
    %c0_i32_0 = arith.constant 0 : i32
    %c0_i32_1 = arith.constant 0 : i32
    return %arg0, %c0_i32, %c0_i32_0 : i32, i32, i32
  }
  func.func @transform_2(%arg0: i32) -> (i32, i32, i32) {
    %c0_i32 = arith.constant 0 : i32
    %c0_i32_0 = arith.constant 0 : i32
    %c0_i32_1 = arith.constant 0 : i32
    return %arg0, %c0_i32, %c0_i32_0 : i32, i32, i32
  }
  func.func @transform_3(%arg0: i32) -> (i32, i32, i32) {
    %c0_i32 = arith.constant 0 : i32
    %c0_i32_0 = arith.constant 0 : i32
    %c0_i32_1 = arith.constant 0 : i32
    return %arg0, %c0_i32, %c0_i32_0 : i32, i32, i32
  }
}

</mosaic_0001>

<llo_original>
// kernel: tpu_custom_call.1
$region0: #{tpu_custom_call.1}
  #allocation0 [shape = 'u32[]', space=smem, size = 0x4, offset = 0x4, fixed_abs, tag = 'smem constant byte address 0x4 - core index']
  #allocation1 [shape = 'u32[72,128]{1,0:T(1,128)}', space=vmem, size = 0x9000, scoped, tag = 'internal scratch']
  %s0 = inlined_call_operand.hbm [shape: f32[5,128], index: 0, kind: input, shape index: {}]
  %s1 = inlined_call_operand.hbm [shape: f32[11,1,128], index: 1, kind: input, shape index: {}]
  %s2 = inlined_call_operand.hbm [shape: f32[11,18,128], index: 2, kind: input, shape index: {}]
  %s3 = inlined_call_operand.hbm [shape: f32[11,24,128], index: 3, kind: output, shape index: {}]
  %s4 = sld [smem:[#allocation0]]
  $region57: #{tpu_custom_call.1} parent=0
    _
  %s6 = ssub.s32 1, %s4
  %s7 = scalar_select 0, %s6, %s4
  $region1: #{tpu_custom_call.1} parent=0
    #allocation2 [shape = 'u8[4096]{0}', space=vmem, size = 0x1000, scoped, tag = 'input window, operand 0, single buffered']
    #allocation3 [shape = 's32[2]{0}', space=sflag, size = 0x8, scoped, tag = 'scoped memory for tpu_custom_call.1']
    #allocation4 [shape = 's32[2]{0}', space=sflag, size = 0x8, scoped, tag = 'scoped memory for tpu_custom_call.1']
    #allocation5 [shape = 'u8[6144]{0}', space=vmem, size = 0x1800, scoped, tag = 'input window, operand 1']
    #allocation6 [shape = 's32[2]{0}', space=sflag, size = 0x8, scoped, tag = 'scoped memory for tpu_custom_call.1']
    #allocation7 [shape = 'u8[147456]{0}', space=vmem, size = 0x24000, scoped, tag = 'input window, operand 2']
    #allocation8 [shape = 'u8[147456]{0}', space=vmem, size = 0x24000, scoped, tag = 'output window, operand 0']
    %8 = vsyncpa [#allocation3], 0
    %9 = vsyncpa [#allocation6], 0
    %s10 = scalar_lea.sflag [#allocation6], 1
    %11 = vsyncpa %s10, 0
    %12 = vsyncpa [#allocation4], 0
    %s13 = scalar_lea.sflag [#allocation4], 1
    %14 = vsyncpa %s13, 0
    loop: start=0, step=1, limit=4
    $region2: #{tpu_custom_call.1} parent=1 // loop_pre_header
      _
    $region3: #{tpu_custom_call.1} parent=1 // loop_header
      %s16 = sphi 0, %s20
      %p17 = scmp.ge.s32.totalorder %s16, 4
      %s24 = sphi 0, %s24
      %s26 = sphi 0, %s24
      %s27 = sphi 0, %s26
      %s41 = sphi 0, %s27
      %s47 = sphi 0, %s49
      %s50 = sphi 0, %s47
      %s51 = sphi 0, %s50
      %s67 = sphi 0, %s51
      %s73 = sphi 0, %s75
      %s76 = sphi 0, %s73
      %s77 = sphi 0, %s76
      %s93 = sphi 0, %s77
      %s99 = sphi 0, %s101
      %s102 = sphi 0, %s99
      %s103 = sphi 0, %s102
      %s119 = sphi 0, %s103
    $region4: #{tpu_custom_call.1} parent=1 // loop_header_branch
      %19 = sbr.rel (%p17) target = $region8
    $region5: #{tpu_custom_call.1} parent=1 // loop_body
      %s21 = ssub.s32 %s16, 1
      %s22 = ssub.s32 %s16, 2
      %s23 = sadd.s32 %s16, 1
      %s25 = sadd.s32 %s24, 1
      %p28 = scmp.eq.s32.totalorder %s16, 1
      %p29 = scmp.ne.s32.totalorder %s24, %s26
      %p30 = scmp.eq.s32.totalorder %s16, 0
      %p31 = por %p29, %p30
      %p32 = scmp.ne.s32.totalorder %s24, %s26
      %p33 = scmp.eq.s32.totalorder %s21, 1
      %p34 = por %p32, %p33
      %p35 = scmp.ne.s32.totalorder %s26, %s27
      %p36 = scmp.eq.s32.totalorder %s21, 0
      %p37 = por %p35, %p36
      %p38 = scmp.ne.s32.totalorder %s26, %s27
      %p39 = scmp.eq.s32.totalorder %s22, 1
      %p40 = por %p38, %p39
      %p42 = scmp.ne.s32.totalorder %s27, %s41
      %p43 = scmp.eq.s32.totalorder %s22, 0
      %p44 = por %p42, %p43
      %s45 = ssub.s32 %s16, %s23
      %p46 = scmp.eq.s32.totalorder %s45, 0
      %s48 = sadd.s32 %s47, 1
      %s49 = scalar_select %p46, %s47, %s48
      %p52 = pneg %p46
      %p53 = scmp.eq.s32.totalorder %s16, 1
      %p54 = por %p52, %p53
      %p55 = scmp.ne.s32.totalorder %s47, %s50
      %p56 = scmp.eq.s32.totalorder %s16, 0
      %p57 = por %p55, %p56
      %p58 = scmp.ne.s32.totalorder %s47, %s50
      %p59 = scmp.eq.s32.totalorder %s21, 1
      %p60 = por %p58, %p59
      %p61 = scmp.ne.s32.totalorder %s50, %s51
      %p62 = scmp.eq.s32.totalorder %s21, 0
      %p63 = por %p61, %p62
      %p64 = scmp.ne.s32.totalorder %s50, %s51
      %p65 = scmp.eq.s32.totalorder %s22, 1
      %p66 = por %p64, %p65
      %p68 = scmp.ne.s32.totalorder %s51, %s67
      %p69 = scmp.eq.s32.totalorder %s22, 0
      %p70 = por %p68, %p69
      %s71 = ssub.s32 %s16, %s23
      %p72 = scmp.eq.s32.totalorder %s71, 0
      %s74 = sadd.s32 %s73, 1
      %s75 = scalar_select %p72, %s73, %s74
      %p78 = pneg %p72
      %p79 = scmp.eq.s32.totalorder %s16, 1
      %p80 = por %p78, %p79
      %p81 = scmp.ne.s32.totalorder %s73, %s76
      %p82 = scmp.eq.s32.totalorder %s16, 0
      %p83 = por %p81, %p82
      %p84 = scmp.ne.s32.totalorder %s73, %s76
      %p85 = scmp.eq.s32.totalorder %s21, 1
      %p86 = por %p84, %p85
      %p87 = scmp.ne.s32.totalorder %s76, %s77
      %p88 = scmp.eq.s32.totalorder %s21, 0
      %p89 = por %p87, %p88
      %p90 = scmp.ne.s32.totalorder %s76, %s77
      %p91 = scmp.eq.s32.totalorder %s22, 1
      %p92 = por %p90, %p91
      %p94 = scmp.ne.s32.totalorder %s77, %s93
      %p95 = scmp.eq.s32.totalorder %s22, 0
      %p96 = por %p94, %p95
      %s97 = ssub.s32 %s16, %s23
      %p98 = scmp.eq.s32.totalorder %s97, 0
      %s100 = sadd.s32 %s99, 1
      %s101 = scalar_select %p98, %s99, %s100
      %p104 = pneg %p98
      %p105 = scmp.eq.s32.totalorder %s16, 1
      %p106 = por %p104, %p105
      %p107 = scmp.ne.s32.totalorder %s99, %s102
      %p108 = scmp.eq.s32.totalorder %s16, 0
      %p109 = por %p107, %p108
      %p110 = scmp.ne.s32.totalorder %s99, %s102
      %p111 = scmp.eq.s32.totalorder %s21, 1
      %p112 = por %p110, %p111
      %p113 = scmp.ne.s32.totalorder %s102, %s103
      %p114 = scmp.eq.s32.totalorder %s21, 0
      %p115 = por %p113, %p114
      %p116 = scmp.ne.s32.totalorder %s102, %s103
      %p117 = scmp.eq.s32.totalorder %s22, 1
      %p118 = por %p116, %p117
      %p120 = scmp.ne.s32.totalorder %s103, %s119
      %p121 = scmp.eq.s32.totalorder %s22, 0
      %p122 = por %p120, %p121
      %p123 = scmp.le.s32.totalorder 1, %s16
      %p124 = scmp.lt.s32.totalorder %s16, 3
      %p125 = pnand %p123, %p124
      %p126 = pneg %p125
      // Predicated region
      $region9: #{tpu_custom_call.1} parent=5 // pred_check
        _
      $region10: #{tpu_custom_call.1} parent=5 // pred_check_branch
        %128 = sbr.rel (%p125) target = $region12
      $region11: #{tpu_custom_call.1} parent=5 // pred_region
        %s129 = ssub.s32 %s16, 1
        // Predicated region
        $region13: #{tpu_custom_call.1} parent=11 // pred_check
          %p130 = pneg %p37
        $region14: #{tpu_custom_call.1} parent=11 // pred_check_branch
          %132 = sbr.rel (%p130) target = $region16
        $region15: #{tpu_custom_call.1} parent=11 // pred_region
          %134 = vsyncadd [#allocation3], 0
          %s136 = sshll.u32 %s0, 4
          %s137 = int_to_ptr.hbm [resolvable:$true] %s136
          %s138 = sshll.u32 [#allocation2], 4
          %s139 = int_to_ptr.vmem [resolvable:$true] %s138
          %141 = dma.hbm_to_vmem [thread:$0]  %s137, 128, %s139, [#allocation3]
        $region16: #{tpu_custom_call.1} parent=11 // pred_fallthru
          _
      $region12: #{tpu_custom_call.1} parent=5 // pred_fallthru
        _
      %p142 = scmp.lt.s32.totalorder %s16, 2
      // Predicated region
      $region17: #{tpu_custom_call.1} parent=5 // pred_check
        %p143 = pneg %p142
      $region18: #{tpu_custom_call.1} parent=5 // pred_check_branch
        %145 = sbr.rel (%p143) target = $region20
      $region19: #{tpu_custom_call.1} parent=5 // pred_region
        // Predicated region
        $region21: #{tpu_custom_call.1} parent=19 // pred_check
          %p146 = pneg %p57
        $region22: #{tpu_custom_call.1} parent=19 // pred_check_branch
          %148 = sbr.rel (%p146) target = $region24
        $region23: #{tpu_custom_call.1} parent=19 // pred_region
          %s149 = sand.u32 %s16, 1
          %s150 = scalar_lea.sflag [#allocation6], %s149
          %s151 = sand.u32 %s47, 1
          %s152 = smul.addr %s151, 6
          %s153 = scalar_lea.vmem [#allocation5], %s152
          %s154 = smul.u32 6, %s16
          %s155 = ssub.s32 11, %s154
          %p156 = scmp.lt.s32.totalorder %s155, 6
          %s157 = scalar_select %p156, %s155, 6
          %s158 = ssub.s32 6, %s157
          %s159 = sshll.u32 %s158, 4
          %160 = vsyncadd %s150, %s159
          %p161 = scmp.ne.s32.totalorder 0, %s157
          %s162 = scalar_lea.hbm %s1, %s154
          %s163 = sshll.u32 %s162, 4
          %s164 = int_to_ptr.hbm [resolvable:$true] %s163
          %s165 = sshll.u32 %s153, 4
          %s166 = int_to_ptr.vmem [resolvable:$true] %s165
          %s167 = sshll.u32 %s157, 4
          %171 = dma.hbm_to_vmem [thread:$0]  (%p161), %s164, %s167, %s166, %s150, 16, 16, 1
        $region24: #{tpu_custom_call.1} parent=19 // pred_fallthru
          _
        // Predicated region
        $region25: #{tpu_custom_call.1} parent=19 // pred_check
          %p172 = pneg %p83
        $region26: #{tpu_custom_call.1} parent=19 // pred_check_branch
          %174 = sbr.rel (%p172) target = $region28
        $region27: #{tpu_custom_call.1} parent=19 // pred_region
          %s175 = sand.u32 %s16, 1
          %s176 = scalar_lea.sflag [#allocation6], %s175
          %s177 = sand.u32 %s73, 1
          %s178 = smul.addr %s177, 144
          %s179 = scalar_lea.vmem [#allocation7], %s178
          %s180 = smul.u32 6, %s16
          %s181 = ssub.s32 11, %s180
          %p182 = scmp.lt.s32.totalorder %s181, 6
          %s183 = scalar_select %p182, %s181, 6
          %s184 = smul.u32 8, %s183
          %s185 = smul.u32 %s184, 3
          %s186 = ssub.s32 144, %s185
          %s187 = sshll.u32 %s186, 4
          %188 = vsyncadd %s176, %s187
          %p189 = scmp.ne.s32.totalorder 0, %s185
          %s190 = smul.addr %s180, 3
          %s191 = smul.addr %s190, 8
          %s192 = scalar_lea.hbm %s2, %s191
          %s193 = smul.u32 %s183, 3
          %s194 = smul.u32 8, %s193
          %s195 = sshll.u32 %s192, 4
          %s196 = int_to_ptr.hbm [resolvable:$true] %s195
          %s197 = sshll.u32 %s179, 4
          %s198 = int_to_ptr.vmem [resolvable:$true] %s197
          %s199 = sshll.u32 %s194, 4
          %203 = dma.hbm_to_vmem [thread:$0]  (%p189), %s196, %s199, %s198, %s176, 128, 128, 8
        $region28: #{tpu_custom_call.1} parent=19 // pred_fallthru
          _
      $region20: #{tpu_custom_call.1} parent=5 // pred_fallthru
        _
      %p204 = scmp.le.s32.totalorder 1, %s16
      %p205 = scmp.lt.s32.totalorder %s16, 3
      %p206 = pnand %p204, %p205
      %p207 = pneg %p206
      // Predicated region
      $region29: #{tpu_custom_call.1} parent=5 // pred_check
        _
      $region30: #{tpu_custom_call.1} parent=5 // pred_check_branch
        %209 = sbr.rel (%p206) target = $region32
      $region31: #{tpu_custom_call.1} parent=5 // pred_region
        %s210 = ssub.s32 %s16, 1
        // Predicated region
        $region33: #{tpu_custom_call.1} parent=31 // pred_check
          %p211 = pneg %p37
        $region34: #{tpu_custom_call.1} parent=31 // pred_check_branch
          %213 = sbr.rel (%p211) target = $region36
        $region35: #{tpu_custom_call.1} parent=31 // pred_region
          %215 = dma.done [#allocation3], 128
        $region36: #{tpu_custom_call.1} parent=31 // pred_fallthru
          _
        %s216 = sand.u32 %s21, 1
        %s217 = scalar_lea.sflag [#allocation6], %s216
        %s218 = sand.u32 %s50, 1
        %s219 = smul.addr %s218, 6
        %s220 = scalar_lea.vmem [#allocation5], %s219
        // Predicated region
        $region37: #{tpu_custom_call.1} parent=31 // pred_check
          %p221 = pneg %p63
        $region38: #{tpu_custom_call.1} parent=31 // pred_check_branch
          %223 = sbr.rel (%p221) target = $region40
        $region39: #{tpu_custom_call.1} parent=31 // pred_region
          %225 = dma.done %s217, 96
        $region40: #{tpu_custom_call.1} parent=31 // pred_fallthru
          _
        %s226 = sand.u32 %s21, 1
        %s227 = scalar_lea.sflag [#allocation6], %s226
        %s228 = sand.u32 %s76, 1
        %s229 = smul.addr %s228, 144
        %s230 = scalar_lea.vmem [#allocation7], %s229
        // Predicated region
        $region41: #{tpu_custom_call.1} parent=31 // pred_check
          %p231 = pneg %p89
        $region42: #{tpu_custom_call.1} parent=31 // pred_check_branch
          %233 = sbr.rel (%p231) target = $region44
        $region43: #{tpu_custom_call.1} parent=31 // pred_region
          %235 = dma.done %s227, 2304
        $region44: #{tpu_custom_call.1} parent=31 // pred_fallthru
          _
        %p236 = pneg %p37
        %p237 = pneg %p34
        %s238 = sand.u32 %s21, 1
        %s239 = scalar_lea.sflag [#allocation6], %s238
        %s240 = sand.u32 %s50, 1
        %s241 = smul.addr %s240, 6
        %s242 = scalar_lea.vmem [#allocation5], %s241
        %p243 = pneg %p63
        %p244 = pneg %p60
        %s245 = sand.u32 %s21, 1
        %s246 = scalar_lea.sflag [#allocation6], %s245
        %s247 = sand.u32 %s76, 1
        %s248 = smul.addr %s247, 144
        %s249 = scalar_lea.vmem [#allocation7], %s248
        %p250 = pneg %p89
        %p251 = pneg %p86
        %p252 = pneg %p115
        %p253 = pneg %p112
        %s254 = sand.u32 %s102, 1
        %s255 = scalar_lea.sflag [#allocation4], %s254
        %s256 = sand.u32 %s102, 1
        %s257 = smul.addr %s256, 144
        %s258 = scalar_lea.vmem [#allocation8], %s257
        %s259 = smul.u32 6, %s21
        %s260 = ssub.s32 11, %s259
        %p261 = scmp.lt.s32.totalorder %s260, 6
        %s262 = scalar_select %p261, %s260, 6
        %s263 = smul.u32 6, %s21
        %s264 = ssub.s32 11, %s263
        %p265 = scmp.lt.s32.totalorder %s264, 6
        %s266 = scalar_select %p265, %s264, 6
        %s267 = smul.u32 8, %s266
        %s268 = smul.u32 %s267, 3
        %s269 = smul.u32 6, %s21
        %s270 = ssub.s32 11, %s269
        %p271 = scmp.lt.s32.totalorder %s270, 6
        %s272 = scalar_select %p271, %s270, 6
        %s273 = smul.u32 8, %s272
        %s274 = smul.u32 %s273, 3
        %v275 = vld [vmem:[%s220] sm:$0x1]
        %v276 = vld [vmem:[%s220 + $0x1] sm:$0x1]
        %v277 = vld [vmem:[%s220 + $0x2] sm:$0x1]
        %v278 = vld [vmem:[%s220 + $0x3] sm:$0x1]
        %v279 = vld [vmem:[%s220 + $0x4] sm:$0x1]
        %v280 = vld [vmem:[%s220 + $0x5] sm:$0x1]
        %281 = vst [vmem:[%s258] sm:$0x1] %v275
        %282 = vst [vmem:[%s258 + $0x18] sm:$0x1] %v276
        %283 = vst [vmem:[%s258 + $0x30] sm:$0x1] %v277
        %284 = vst [vmem:[%s258 + $0x48] sm:$0x1] %v278
        %285 = vst [vmem:[%s258 + $0x60] sm:$0x1] %v279
        %286 = vst [vmem:[%s258 + $0x78] sm:$0x1] %v280
        %v287 = vld [vmem:[#allocation2] sm:$0x1f]
        %288 = vst [vmem:[%s258 + $0x1] sm:$0x1f] %v287
        %289 = vst [vmem:[%s258 + $0x19] sm:$0x1f] %v287
        %290 = vst [vmem:[%s258 + $0x31] sm:$0x1f] %v287
        %291 = vst [vmem:[%s258 + $0x49] sm:$0x1f] %v287
        %292 = vst [vmem:[%s258 + $0x61] sm:$0x1f] %v287
        %293 = vst [vmem:[%s258 + $0x79] sm:$0x1f] %v287
        %v294 = vld [vmem:[%s230] sm:$0xff]
        %v295 = vld [vmem:[%s230 + $0x8] sm:$0xff]
        %v296 = vld [vmem:[%s230 + $0x10] sm:$0x3]
        %v297 = vld [vmem:[%s230 + $0x18] sm:$0xff]
        %v298 = vld [vmem:[%s230 + $0x20] sm:$0xff]
        %v299 = vld [vmem:[%s230 + $0x28] sm:$0x3]
        %v300 = vld [vmem:[%s230 + $0x30] sm:$0xff]
        %v301 = vld [vmem:[%s230 + $0x38] sm:$0xff]
        %v302 = vld [vmem:[%s230 + $0x40] sm:$0x3]
        %v303 = vld [vmem:[%s230 + $0x48] sm:$0xff]
        %v304 = vld [vmem:[%s230 + $0x50] sm:$0xff]
        %v305 = vld [vmem:[%s230 + $0x58] sm:$0x3]
        %v306 = vld [vmem:[%s230 + $0x60] sm:$0xff]
        %v307 = vld [vmem:[%s230 + $0x68] sm:$0xff]
        %v308 = vld [vmem:[%s230 + $0x70] sm:$0x3]
        %v309 = vld [vmem:[%s230 + $0x78] sm:$0xff]
        %v310 = vld [vmem:[%s230 + $0x80] sm:$0xff]
        %v311 = vld [vmem:[%s230 + $0x88] sm:$0x3]
        %312 = vst [vmem:[%s258 + $0x6] sm:$0xff] %v294
        %313 = vst [vmem:[%s258 + $0xe] sm:$0xff] %v295
        %314 = vst [vmem:[%s258 + $0x16] sm:$0x3] %v296
        %315 = vst [vmem:[%s258 + $0x1e] sm:$0xff] %v297
        %316 = vst [vmem:[%s258 + $0x26] sm:$0xff] %v298
        %317 = vst [vmem:[%s258 + $0x2e] sm:$0x3] %v299
        %318 = vst [vmem:[%s258 + $0x36] sm:$0xff] %v300
        %319 = vst [vmem:[%s258 + $0x3e] sm:$0xff] %v301
        %320 = vst [vmem:[%s258 + $0x46] sm:$0x3] %v302
        %321 = vst [vmem:[%s258 + $0x4e] sm:$0xff] %v303
        %322 = vst [vmem:[%s258 + $0x56] sm:$0xff] %v304
        %323 = vst [vmem:[%s258 + $0x5e] sm:$0x3] %v305
        %324 = vst [vmem:[%s258 + $0x66] sm:$0xff] %v306
        %325 = vst [vmem:[%s258 + $0x6e] sm:$0xff] %v307
        %326 = vst [vmem:[%s258 + $0x76] sm:$0x3] %v308
        %327 = vst [vmem:[%s258 + $0x7e] sm:$0xff] %v309
        %328 = vst [vmem:[%s258 + $0x86] sm:$0xff] %v310
        %329 = vst [vmem:[%s258 + $0x8e] sm:$0x3] %v311
        %s330 = sand.u32 %s102, 1
        %s331 = scalar_lea.sflag [#allocation4], %s330
        %s332 = sand.u32 %s102, 1
        %s333 = smul.addr %s332, 144
        %s334 = scalar_lea.vmem [#allocation8], %s333
        // Predicated region
        $region45: #{tpu_custom_call.1} parent=31 // pred_check
          %p335 = pneg %p112
        $region46: #{tpu_custom_call.1} parent=31 // pred_check_branch
          %337 = sbr.rel (%p335) target = $region48
        $region47: #{tpu_custom_call.1} parent=31 // pred_region
          %s338 = smul.u32 6, %s21
          %s339 = ssub.s32 11, %s338
          %p340 = scmp.lt.s32.totalorder %s339, 6
          %s341 = scalar_select %p340, %s339, 6
          %s342 = smul.u32 8, %s341
          %s343 = smul.u32 %s342, 3
          %s344 = ssub.s32 144, %s343
          %s345 = sshll.u32 %s344, 4
          %346 = vsyncadd %s331, %s345
          %p347 = scmp.ne.s32.totalorder 0, %s343
          %s348 = smul.addr %s338, 3
          %s349 = smul.addr %s348, 8
          %s350 = scalar_lea.hbm %s3, %s349
          %s351 = smul.u32 %s341, 3
          %s352 = smul.u32 8, %s351
          %s353 = sshll.u32 %s334, 4
          %s354 = int_to_ptr.vmem [resolvable:$true] %s353
          %s355 = sshll.u32 %s350, 4
          %s356 = int_to_ptr.hbm [resolvable:$true] %s355
          %s357 = sshll.u32 %s352, 4
          %361 = dma.vmem_to_hbm [thread:$0]  (%p347), %s354, %s357, %s356, %s331, 128, 128, 8
        $region48: #{tpu_custom_call.1} parent=31 // pred_fallthru
          _
      $region32: #{tpu_custom_call.1} parent=5 // pred_fallthru
        _
      %p362 = scmp.le.s32.totalorder 2, %s16
      // Predicated region
      $region49: #{tpu_custom_call.1} parent=5 // pred_check
        %p363 = pneg %p362
      $region50: #{tpu_custom_call.1} parent=5 // pred_check_branch
        %365 = sbr.rel (%p363) target = $region52
      $region51: #{tpu_custom_call.1} parent=5 // pred_region
        %s366 = ssub.s32 %s16, 2
        // Predicated region
        $region53: #{tpu_custom_call.1} parent=51 // pred_check
          %p367 = pneg %p118
        $region54: #{tpu_custom_call.1} parent=51 // pred_check_branch
          %369 = sbr.rel (%p367) target = $region56
        $region55: #{tpu_custom_call.1} parent=51 // pred_region
          %s370 = sand.u32 %s103, 1
          %s371 = scalar_lea.sflag [#allocation4], %s370
          %s372 = sand.u32 %s103, 1
          %s373 = smul.addr %s372, 144
          %s374 = scalar_lea.vmem [#allocation8], %s373
          %376 = dma.done %s371, 2304
        $region56: #{tpu_custom_call.1} parent=51 // pred_fallthru
          _
      $region52: #{tpu_custom_call.1} parent=5 // pred_fallthru
        _
    $region6: #{tpu_custom_call.1} parent=1 // loop_footer
      %s20 = sadd.s32 1, %s16
    $region7: #{tpu_custom_call.1} parent=1 // loop_footer_branch
      %15 = sbr.rel target = $region3
    $region8: #{tpu_custom_call.1} parent=1 // loop_exit
      _
    %377 = vsyncpa [#allocation3], 1
    %s378 = scalar_lea.sflag [#allocation3], 1
    %379 = vsyncpa %s378, 1
    %380 = vsyncpa [#allocation6], 1
    %s381 = scalar_lea.sflag [#allocation6], 1
    %382 = vsyncpa %s381, 1
    %383 = vsyncpa [#allocation4], 1
    %s384 = scalar_lea.sflag [#allocation4], 1
    %385 = vsyncpa %s384, 1

</llo_original>
